<compile_context>
chip_gen: v7x
topology: tpu7x:2x2x1
jax: 0.10.0
libtpu: 0.0.40
codegen_flags: <defaults>
</compile_context>

<pallas_src>
import functools

import jax
import jax.numpy as jnp
from jax.experimental import pallas as pl
from jax.experimental.pallas import tpu as pltpu

LANE = 128
SUBLANE = 8
VREG_ELEMS = SUBLANE * LANE            # 1024
CHUNK_ROWS = 512                       # (512, 128) f32 chunk = 256 KiB
TARGET_BLOCK_BYTES = 4 * 1024 * 1024   # ~4 MiB per input per grid step
NUM_SPLITS = 2                         # leading "parallel" axis (v7x: 2 TCs)


def _dice_partial_kernel(a_ref, b_ref, ab_out_ref, bb_out_ref, *,
                         total_rows, block_rows, chunk_rows, n_chunks,
                         blocks_per_split, needs_mask):
    c = pl.program_id(0)      # split (TensorCore) index
    k = pl.program_id(1)      # block index within the split

    # Output blocks depend only on `c` -> VMEM-resident accumulators across k.
    @pl.when(k == 0)
    def _():
        ab_out_ref[...] = jnp.zeros_like(ab_out_ref)
        bb_out_ref[...] = jnp.zeros_like(bb_out_ref)

    base_row = (c * blocks_per_split + k) * block_rows

    def accumulate(mask_rows):
        # Chunked fold: (chunk_rows,128) -> (8,128) with pure vreg-wise adds
        # (VPU only); bounded live ranges, no block-sized temporaries.
        def body(ci, carry):
            ab_acc, bb_acc = carry
            r = pl.multiple_of(ci * chunk_rows, chunk_rows)
            a = a_ref[pl.ds(r, chunk_rows), :].astype(jnp.float32)
            b = b_ref[pl.ds(r, chunk_rows), :].astype(jnp.float32)
            if mask_rows:
                # Rows past the real array (partial trailing block or a
                # duplicated overshoot block) hold unspecified data: zero them
                # out *before* multiplying.
                row_ids = base_row + r + jax.lax.broadcasted_iota(
                    jnp.int32, (chunk_rows, LANE), 0)
                valid = row_ids < total_rows
                a = jnp.where(valid, a, 0.0)
                b = jnp.where(valid, b, 0.0)
            ab = (a * b).reshape(-1, SUBLANE, LANE).sum(axis=0)
            bb = (b * b).reshape(-1, SUBLANE, LANE).sum(axis=0)
            return ab_acc + ab, bb_acc + bb

        init = (jnp.zeros((SUBLANE, LANE), jnp.float32),
                jnp.zeros((SUBLANE, LANE), jnp.float32))
        return jax.lax.fori_loop(0, n_chunks, body, init,
                                 unroll=(n_chunks <= 8))

    def flush(parts):
        ab, bb = parts
        ab_out_ref[...] += ab[None, :, :]
        bb_out_ref[...] += bb[None, :, :]

    if needs_mask:
        # Only the (at most one per split) partial/duplicated block pays for
        # the mask; the steady-state path is mask-free.
        is_partial = base_row + block_rows > total_rows

        @pl.when(jnp.logical_not(is_partial))
        def _():
            flush(accumulate(False))

        @pl.when(is_partial)
        def _():
            flush(accumulate(True))
    else:
        flush(accumulate(False))


def _partial_sums_pallas(a2d, b2d):
    """Returns (sum(a*b), sum(b*b)) over a (rows, 128) aligned pair, rows % 8 == 0."""
    rows = a2d.shape[0]
    itemsize = jnp.dtype(a2d.dtype).itemsize
    # ~4 MiB per input per step regardless of dtype width.
    target_rows = max(CHUNK_ROWS, TARGET_BLOCK_BYTES // (LANE * max(itemsize, 1)))

    if rows <= CHUNK_ROWS:
        block_rows = rows
        chunk_rows = rows
    else:
        block_rows = min(target_rows, (rows // CHUNK_ROWS) * CHUNK_ROWS)
        chunk_rows = CHUNK_ROWS
    n_chunks = block_rows // chunk_rows

    num_blocks = pl.cdiv(rows, block_rows)
    num_splits = min(NUM_SPLITS, num_blocks)
    blocks_per_split = pl.cdiv(num_blocks, num_splits)
    total_grid_blocks = num_splits * blocks_per_split
    needs_mask = total_grid_blocks * block_rows > rows

    if total_grid_blocks > num_blocks:
        # Overshoot blocks (grid rounding) are clamped to the last real block
        # and fully masked out inside the kernel.
        def in_index(c, k):
            return (jnp.minimum(c * blocks_per_split + k, num_blocks - 1), 0)
    else:
        def in_index(c, k):
            return (c * blocks_per_split + k, 0)

    kernel = functools.partial(
        _dice_partial_kernel,
        total_rows=rows, block_rows=block_rows, chunk_rows=chunk_rows,
        n_chunks=n_chunks, blocks_per_split=blocks_per_split,
        needs_mask=needs_mask)

    n_elems = rows * LANE
    cost = pl.CostEstimate(
        flops=4 * n_elems,
        transcendentals=0,
        bytes_accessed=2 * n_elems * itemsize
        + 2 * num_splits * SUBLANE * LANE * 4)

    ab_parts, bb_parts = pl.pallas_call(
        kernel,
        out_shape=(
            jax.ShapeDtypeStruct((num_splits, SUBLANE, LANE), jnp.float32),
            jax.ShapeDtypeStruct((num_splits, SUBLANE, LANE), jnp.float32),
        ),
        grid=(num_splits, blocks_per_split),
        in_specs=[
            pl.BlockSpec((block_rows, LANE), in_index),
            pl.BlockSpec((block_rows, LANE), in_index),
        ],
        out_specs=(
            pl.BlockSpec((1, SUBLANE, LANE), lambda c, k: (c, 0, 0)),
            pl.BlockSpec((1, SUBLANE, LANE), lambda c, k: (c, 0, 0)),
        ),
        compiler_params=pltpu.CompilerParams(
            dimension_semantics=("parallel", "arbitrary"),
            vmem_limit_bytes=48 * 1024 * 1024),
        cost_estimate=cost,
    )(a2d, b2d)
    return jnp.sum(ab_parts), jnp.sum(bb_parts)


def dice_coefficient_original(img_src, img_aux, smooth=1.0):
    """Pallas equivalent of DiceCoeffiencyOriginal.forward. Returns f32 scalar.

    Pass inputs in their native dtype (f32 / bf16 / ...): the kernel upcasts
    per-chunk to f32 for accumulation, so never pre-upcast at the call site.
    """
    a_flat = jnp.ravel(img_src)
    b_flat = jnp.ravel(img_aux)
    n = a_flat.shape[0]
    n_aligned = (n // VREG_ELEMS) * VREG_ELEMS
    rows = n_aligned // LANE

    inter = jnp.float32(0.0)
    b_sum = jnp.float32(0.0)
    if rows > 0:
        # Free slice + reshape of the 1024-aligned prefix (no pad, no copy of
        # the whole array).
        a2d = a_flat[:n_aligned].reshape(rows, LANE)
        b2d = b_flat[:n_aligned].reshape(rows, LANE)
        i_part, b_part = _partial_sums_pallas(a2d, b2d)
        inter = inter + i_part
        b_sum = b_sum + b_part
    if n_aligned != n:
        # < 1024-element tail: trivial jnp slice-sum instead of padding/copying
        # the entire input.
        ta = a_flat[n_aligned:].astype(jnp.float32)
        tb = b_flat[n_aligned:].astype(jnp.float32)
        inter = inter + jnp.sum(ta * tb)
        b_sum = b_sum + jnp.sum(tb * tb)

    smooth = jnp.float32(smooth)
    # A_sum == intersection in the reference formulation.
    return 1.0 - (2.0 * inter + smooth) / (inter + b_sum + smooth)


def _reference(img_src, img_aux, smooth=1.0):
    iflat = img_src.reshape(-1)
    tflat = img_aux.reshape(-1)
    intersection = jnp.sum(iflat * tflat)
    a_sum = jnp.sum(tflat * iflat)
    b_sum = jnp.sum(tflat * tflat)
    return 1.0 - (2.0 * intersection + smooth) / (a_sum + b_sum + smooth)


if __name__ == "__main__":
    key = jax.random.PRNGKey(0)
    k1, k2, k3, k4 = jax.random.split(key, 4)

    # Small NCHW-like "images" (single block, single split, no masking path).
    img_src = jax.random.uniform(k1, (2, 4, 16, 16), dtype=jnp.float32)
    img_aux = jax.random.uniform(k2, (2, 4, 16, 16), dtype=jnp.float32)
    result = jax.block_until_ready(dice_coefficient_original(img_src, img_aux))
    ref = _reference(img_src, img_aux)
    assert jnp.allclose(result, ref, rtol=1e-5, atol=1e-5), (result, ref)

    # Larger, awkwardly-shaped input: exercises the 2-way split, the masked
    # partial block, the chunked fori_loop and the wrapper-side tail sum.
    big_src = jax.random.uniform(k3, (2, 3, 300, 301), dtype=jnp.float32)
    big_aux = jax.random.uniform(k4, (2, 3, 300, 301), dtype=jnp.float32)
    result2 = jax.block_until_ready(dice_coefficient_original(big_src, big_aux))
    ref2 = _reference(big_src, big_aux)
    assert jnp.allclose(result2, ref2, rtol=1e-4, atol=1e-4), (result2, ref2)

    print("KERNEL_OK")
</pallas_src>

<mosaic_0001>
module attributes {stable_mosaic.version = 11 : i64} {
  func.func @_dice_partial_kernel(%arg0: i32, %arg1: i32, %arg2: memref<16x128xf32, #tpu.memory_space<vmem>>, %arg3: memref<16x128xf32, #tpu.memory_space<vmem>>, %arg4: memref<1x8x128xf32, #tpu.memory_space<vmem>>, %arg5: memref<1x8x128xf32, #tpu.memory_space<vmem>>) attributes {dimension_semantics = [#tpu.dimension_semantics<parallel>, #tpu.dimension_semantics<arbitrary>], iteration_bounds = array<i64: 1, 1>, scalar_prefetch = 0 : i64, scratch_operands = 0 : i64, tpu.core_type = #tpu.core_type<tc>, window_params = [{transform_indices = @transform_0, window_bounds = array<i64: 16, 128>}, {transform_indices = @transform_1, window_bounds = array<i64: 16, 128>}, {transform_indices = @transform_2, window_bounds = array<i64: 1, 8, 128>}, {transform_indices = @transform_3, window_bounds = array<i64: 1, 8, 128>}]} {
    %c0_i32 = arith.constant 0 : i32
    %0 = arith.cmpi eq, %arg1, %c0_i32 : i32
    %1 = arith.extui %0 : i1 to i32
    %c0_i32_0 = arith.constant 0 : i32
    %2 = arith.cmpi ne, %1, %c0_i32_0 : i32
    scf.if %2 {
      %cst_18 = arith.constant 0.000000e+00 : f32
      %27 = vector.broadcast %cst_18 : f32 to vector<1x8x128xf32>
      %c0_19 = arith.constant 0 : index
      %c0_20 = arith.constant 0 : index
      %c0_21 = arith.constant 0 : index
      %28 = vector.load %arg4[%c0_19, %c0_20, %c0_21] : memref<1x8x128xf32, #tpu.memory_space<vmem>>, vector<1x8x128xf32>
      tpu.vector_store %arg4[%c0_19, %c0_20, %c0_21], %27 {strides = array<i32>} : memref<1x8x128xf32, #tpu.memory_space<vmem>>, vector<1x8x128xf32>,
      %cst_22 = arith.constant 0.000000e+00 : f32
      %29 = vector.broadcast %cst_22 : f32 to vector<1x8x128xf32>
      %c0_23 = arith.constant 0 : index
      %c0_24 = arith.constant 0 : index
      %c0_25 = arith.constant 0 : index
      %30 = vector.load %arg5[%c0_23, %c0_24, %c0_25] : memref<1x8x128xf32, #tpu.memory_space<vmem>>, vector<1x8x128xf32>
      tpu.vector_store %arg5[%c0_23, %c0_24, %c0_25], %29 {strides = array<i32>} : memref<1x8x128xf32, #tpu.memory_space<vmem>>, vector<1x8x128xf32>,
    } else {
    }
    %cst = arith.constant 0.000000e+00 : f32
    %3 = vector.broadcast %cst : f32 to vector<8x128xf32>
    %cst_1 = arith.constant 0.000000e+00 : f32
    %4 = vector.broadcast %cst_1 : f32 to vector<8x128xf32>
    %c0_i32_2 = arith.constant 0 : i32
    %c16_i32 = arith.constant 16 : i32
    %5 = arith.muli %c0_i32_2, %c16_i32 : i32
    %6 = tpu.assume_multiple %5, 16 : i32
    %7 = arith.index_cast %6 : i32 to index
    %c0 = arith.constant 0 : index
    %8 = vector.load %arg2[%7, %c0] : memref<16x128xf32, #tpu.memory_space<vmem>>, vector<16x128xf32>
    %9 = arith.index_cast %6 : i32 to index
    %c0_3 = arith.constant 0 : index
    %10 = vector.load %arg3[%9, %c0_3] : memref<16x128xf32, #tpu.memory_space<vmem>>, vector<16x128xf32>
    %11 = arith.mulf %8, %10 : vector<16x128xf32>
    %12 = vector.shape_cast %11 : vector<16x128xf32> to vector<2x8x128xf32>
    %cst_4 = arith.constant dense<0.000000e+00> : vector<8x128xf32>
    %13 = vector.multi_reduction <add>, %12, %cst_4 [0] : vector<2x8x128xf32> to vector<8x128xf32>
    %14 = arith.mulf %10, %10 : vector<16x128xf32>
    %15 = vector.shape_cast %14 : vector<16x128xf32> to vector<2x8x128xf32>
    %cst_5 = arith.constant dense<0.000000e+00> : vector<8x128xf32>
    %16 = vector.multi_reduction <add>, %15, %cst_5 [0] : vector<2x8x128xf32> to vector<8x128xf32>
    %17 = arith.addf %3, %13 : vector<8x128xf32>
    %18 = arith.addf %4, %16 : vector<8x128xf32>
    %c1_i32 = arith.constant 1 : i32
    %c0_6 = arith.constant 0 : index
    %c0_7 = arith.constant 0 : index
    %c0_8 = arith.constant 0 : index
    %19 = vector.load %arg4[%c0_6, %c0_7, %c0_8] : memref<1x8x128xf32, #tpu.memory_space<vmem>>, vector<1x8x128xf32>
    %20 = vector.shape_cast %17 : vector<8x128xf32> to vector<1x8x128xf32>
    %21 = arith.addf %19, %20 : vector<1x8x128xf32>
    %c0_9 = arith.constant 0 : index
    %c0_10 = arith.constant 0 : index
    %c0_11 = arith.constant 0 : index
    %22 = vector.load %arg4[%c0_9, %c0_10, %c0_11] : memref<1x8x128xf32, #tpu.memory_space<vmem>>, vector<1x8x128xf32>
    tpu.vector_store %arg4[%c0_9, %c0_10, %c0_11], %21 {strides = array<i32>} : memref<1x8x128xf32, #tpu.memory_space<vmem>>, vector<1x8x128xf32>,
    %c0_12 = arith.constant 0 : index
    %c0_13 = arith.constant 0 : index
    %c0_14 = arith.constant 0 : index
    %23 = vector.load %arg5[%c0_12, %c0_13, %c0_14] : memref<1x8x128xf32, #tpu.memory_space<vmem>>, vector<1x8x128xf32>
    %24 = vector.shape_cast %18 : vector<8x128xf32> to vector<1x8x128xf32>
    %25 = arith.addf %23, %24 : vector<1x8x128xf32>
    %c0_15 = arith.constant 0 : index
    %c0_16 = arith.constant 0 : index
    %c0_17 = arith.constant 0 : index
    %26 = vector.load %arg5[%c0_15, %c0_16, %c0_17] : memref<1x8x128xf32, #tpu.memory_space<vmem>>, vector<1x8x128xf32>
    tpu.vector_store %arg5[%c0_15, %c0_16, %c0_17], %25 {strides = array<i32>} : memref<1x8x128xf32, #tpu.memory_space<vmem>>, vector<1x8x128xf32>,
    return
  }
  func.func @transform_0(%arg0: i32, %arg1: i32) -> (i32, i32) {
    %c1_i32 = arith.constant 1 : i32
    %0 = arith.muli %arg0, %c1_i32 : i32
    %1 = arith.addi %0, %arg1 : i32
    %c0_i32 = arith.constant 0 : i32
    %c0_i32_0 = arith.constant 0 : i32
    return %1, %c0_i32 : i32, i32
  }
  func.func @transform_1(%arg0: i32, %arg1: i32) -> (i32, i32) {
    %c1_i32 = arith.constant 1 : i32
    %0 = arith.muli %arg0, %c1_i32 : i32
    %1 = arith.addi %0, %arg1 : i32
    %c0_i32 = arith.constant 0 : i32
    %c0_i32_0 = arith.constant 0 : i32
    return %1, %c0_i32 : i32, i32
  }
  func.func @transform_2(%arg0: i32, %arg1: i32) -> (i32, i32, i32) {
    %c0_i32 = arith.constant 0 : i32
    %c0_i32_0 = arith.constant 0 : i32
    %c0_i32_1 = arith.constant 0 : i32
    return %arg0, %c0_i32, %c0_i32_0 : i32, i32, i32
  }
  func.func @transform_3(%arg0: i32, %arg1: i32) -> (i32, i32, i32) {
    %c0_i32 = arith.constant 0 : i32
    %c0_i32_0 = arith.constant 0 : i32
    %c0_i32_1 = arith.constant 0 : i32
    return %arg0, %c0_i32, %c0_i32_0 : i32, i32, i32
  }
}

</mosaic_0001>

<llo_original>
// kernel: tpu_custom_call.1
$region0: #{tpu_custom_call.1}
  #allocation0 [shape = 'u32[]', space=smem, size = 0x4, offset = 0x4, fixed_abs, tag = 'smem constant byte address 0x4 - core index']
  #allocation1 [shape = 'u32[144,128]{1,0:T(1,128)}', space=vmem, size = 0x12000, scoped, tag = 'internal scratch']
  %s0 = inlined_call_operand.hbm [shape: f32[16,128], index: 0, kind: input, shape index: {}]
  %s1 = inlined_call_operand.hbm [shape: f32[16,128], index: 1, kind: input, shape index: {}]
  %s2 = inlined_call_operand.hbm [shape: f32[1,8,128], index: 2, kind: output, shape index: {0}]
  %s3 = inlined_call_operand.hbm [shape: f32[1,8,128], index: 3, kind: output, shape index: {1}]
  %4 = xla_tuple %s2, %s3
  %s5 = sld [smem:[#allocation0]]
  $region38: #{tpu_custom_call.1} parent=0
    _
  %s7 = ssub.s32 1, %s5
  %s8 = scalar_select 0, %s7, %s5
  $region1: #{tpu_custom_call.1} parent=0
    #allocation2 [shape = 'u8[8192]{0}', space=vmem, size = 0x2000, scoped, tag = 'input window, operand 0, single buffered']
    #allocation3 [shape = 's32[1]{0}', space=sflag, size = 0x4, scoped, tag = 'scoped memory for tpu_custom_call.1']
    #allocation4 [shape = 's32[1]{0}', space=sflag, size = 0x4, scoped, tag = 'scoped memory for tpu_custom_call.1']
    #allocation5 [shape = 'u8[8192]{0}', space=vmem, size = 0x2000, scoped, tag = 'input window, operand 1, single buffered']
    #allocation6 [shape = 's32[1]{0}', space=sflag, size = 0x4, scoped, tag = 'scoped memory for tpu_custom_call.1']
    #allocation7 [shape = 'u8[4096]{0}', space=vmem, size = 0x1000, scoped, tag = 'output window, operand 0, single buffered']
    #allocation8 [shape = 'u8[4096]{0}', space=vmem, size = 0x1000, scoped, tag = 'output window, operand 1, single buffered']
    #allocation9 [shape = 's32[1]{0}', space=sflag, size = 0x4, scoped, tag = 'scoped memory for tpu_custom_call.1']
    %9 = vsyncpa [#allocation3], 0
    %10 = vsyncpa [#allocation6], 0
    %11 = vsyncpa [#allocation4], 0
    %12 = vsyncpa [#allocation9], 0
    // Predicated region
    $region2: #{tpu_custom_call.1} parent=1 // pred_check
      _
    $region3: #{tpu_custom_call.1} parent=1 // pred_check_branch
      %14 = sbr.rel (0) target = $region5
    $region4: #{tpu_custom_call.1} parent=1 // pred_region
      %s15 = sadd.s32 0, 0
      %s16 = smul.u32 2, %s15
      %s18 = ssub.s32 256, 256
      %19 = vsyncadd [#allocation3], %s18
      %s20 = smul.addr %s16, 128
      %s21 = scalar_lea.hbm %s0, %s20
      %s22 = sshll.u32 [#allocation2], 4
      %s23 = int_to_ptr.vmem [resolvable:$true] %s22
      %28 = dma.hbm_to_vmem [thread:$0]  %s21, 256, %s23, [#allocation3], 128, 128, 8
    $region5: #{tpu_custom_call.1} parent=1 // pred_fallthru
      _
    // Predicated region
    $region6: #{tpu_custom_call.1} parent=1 // pred_check
      _
    $region7: #{tpu_custom_call.1} parent=1 // pred_check_branch
      %30 = sbr.rel (0) target = $region9
    $region8: #{tpu_custom_call.1} parent=1 // pred_region
      %s31 = sadd.s32 0, 0
      %s32 = smul.u32 2, %s31
      %s34 = ssub.s32 256, 256
      %35 = vsyncadd [#allocation6], %s34
      %s36 = smul.addr %s32, 128
      %s37 = scalar_lea.hbm %s1, %s36
      %s38 = sshll.u32 [#allocation5], 4
      %s39 = int_to_ptr.vmem [resolvable:$true] %s38
      %44 = dma.hbm_to_vmem [thread:$0]  %s37, 256, %s39, [#allocation6], 128, 128, 8
    $region9: #{tpu_custom_call.1} parent=1 // pred_fallthru
      _
    // Predicated region
    $region10: #{tpu_custom_call.1} parent=1 // pred_check
      _
    $region11: #{tpu_custom_call.1} parent=1 // pred_check_branch
      %46 = sbr.rel (0) target = $region13
    $region12: #{tpu_custom_call.1} parent=1 // pred_region
      %47 = dma.done [#allocation3], 256
    $region13: #{tpu_custom_call.1} parent=1 // pred_fallthru
      _
    // Predicated region
    $region14: #{tpu_custom_call.1} parent=1 // pred_check
      _
    $region15: #{tpu_custom_call.1} parent=1 // pred_check_branch
      %49 = sbr.rel (0) target = $region17
    $region16: #{tpu_custom_call.1} parent=1 // pred_region
      %50 = dma.done [#allocation6], 256
    $region17: #{tpu_custom_call.1} parent=1 // pred_fallthru
      _
    %s51 = sadd.s32 0, 0
    %s52 = smul.u32 2, %s51
    %s53 = sadd.s32 0, 0
    %s54 = smul.u32 2, %s53
    %p55 = scmp.eq.s32.totalorder 0, 0
    // Predicated region
    $region18: #{tpu_custom_call.1} parent=1 // pred_check
      %p56 = pneg %p55
    $region19: #{tpu_custom_call.1} parent=1 // pred_check_branch
      %58 = sbr.rel (%p56) target = $region21
    $region20: #{tpu_custom_call.1} parent=1 // pred_region
      %59 = vst [vmem:[#allocation7] sm:$0xff] 0.0
      %60 = vst [vmem:[#allocation8] sm:$0xff] 0.0
    $region21: #{tpu_custom_call.1} parent=1 // pred_fallthru
      _
    %v61 = vld [vmem:[#allocation2] sm:$0xff]
    %v62 = vld [vmem:[#allocation2 + $0x8] sm:$0xff]
    %v63 = vld [vmem:[#allocation5] sm:$0xff]
    %v64 = vld [vmem:[#allocation5 + $0x8] sm:$0xff]
    %v65 = vmul.f32 %v61, %v63
    %v66 = vmul.f32 %v62, %v64
    %v67 = vadd.f32 %v65, %v66
    %v68 = vmul.f32 %v63, %v63
    %v69 = vmul.f32 %v64, %v64
    %v70 = vadd.f32 %v68, %v69
    %v71 = vadd.f32 %v67, 0.0
    %v72 = vadd.f32 %v70, 0.0
    %v73 = vld [vmem:[#allocation7] sm:$0xff]
    %v74 = vadd.f32 %v73, %v71
    %75 = vst [vmem:[#allocation7] sm:$0xff] %v74
    %v76 = vld [vmem:[#allocation8] sm:$0xff]
    %v77 = vadd.f32 %v76, %v72
    %78 = vst [vmem:[#allocation8] sm:$0xff] %v77
    // Predicated region
    $region22: #{tpu_custom_call.1} parent=1 // pred_check
      _
    $region23: #{tpu_custom_call.1} parent=1 // pred_check_branch
      %80 = sbr.rel (0) target = $region25
    $region24: #{tpu_custom_call.1} parent=1 // pred_region
      %s82 = ssub.s32 128, 128
      %83 = vsyncadd [#allocation4], %s82
      %s85 = sshll.u32 [#allocation7], 4
      %s86 = int_to_ptr.vmem [resolvable:$true] %s85
      %88 = dma.vmem_to_hbm [thread:$0]  %s86, 128, %s2, [#allocation4]
    $region25: #{tpu_custom_call.1} parent=1 // pred_fallthru
      _
    // Predicated region
    $region26: #{tpu_custom_call.1} parent=1 // pred_check
      _
    $region27: #{tpu_custom_call.1} parent=1 // pred_check_branch
      %90 = sbr.rel (0) target = $region29
    $region28: #{tpu_custom_call.1} parent=1 // pred_region
      %s92 = ssub.s32 128, 128
      %93 = vsyncadd [#allocation9], %s92
      %s95 = sshll.u32 [#allocation8], 4
      %s96 = int_to_ptr.vmem [resolvable:$true] %s95
      %98 = dma.vmem_to_hbm [thread:$0]  %s96, 128, %s3, [#allocation9]
    $region29: #{tpu_custom_call.1} parent=1 // pred_fallthru
      _
    // Predicated region
    $region30: #{tpu_custom_call.1} parent=1 // pred_check
      _
    $region31: #{tpu_custom_call.1} parent=1 // pred_check_branch
      %100 = sbr.rel (0) target = $region33
    $region32: #{tpu_custom_call.1} parent=1 // pred_region
      %101 = dma.done [#allocation4], 128
    $region33: #{tpu_custom_call.1} parent=1 // pred_fallthru
      _
    // Predicated region
    $region34: #{tpu_custom_call.1} parent=1 // pred_check
      _
    $region35: #{tpu_custom_call.1} parent=1 // pred_check_branch
      %103 = sbr.rel (0) target = $region37
    $region36: #{tpu_custom_call.1} parent=1 // pred_region
      %104 = dma.done [#allocation9], 128
    $region37: #{tpu_custom_call.1} parent=1 // pred_fallthru
      _
    %105 = vsyncpa [#allocation3], 1
    %106 = vsyncpa [#allocation6], 1
    %107 = vsyncpa [#allocation4], 1
    %108 = vsyncpa [#allocation9], 1

</llo_original>
